<compile_context>
chip_gen: v7x
topology: tpu7x:2x2x1
jax: 0.10.0
libtpu: 0.0.40
codegen_flags: <defaults>
</compile_context>

<pallas_src>
import functools

import jax
import jax.numpy as jnp
from jax.experimental import pallas as pl
from jax.experimental.pallas import tpu as pltpu


def _relu6(x):
    return jnp.minimum(jnp.maximum(x, 0.0), 6.0)


def _matmul(x_f32, w, *, vpu_k_threshold=8):
    """1x1-conv matmul for the channels-on-lanes path.

    Tiny contraction dims (Cin <= 8) use K broadcast FMAs on the VPU (the
    MXU would be <1% utilized and the bf16 relayouts cost more than the
    math); otherwise use the MXU with bf16 inputs / f32 accumulation.
    """
    k = x_f32.shape[-1]
    if k <= vpu_k_threshold:
        wf = w.astype(jnp.float32)
        out = x_f32[:, 0:1] * wf[0:1, :]
        for kk in range(1, k):
            out = out + x_f32[:, kk:kk + 1] * wf[kk:kk + 1, :]
        return out
    return jnp.dot(x_f32.astype(jnp.bfloat16), w,
                   preferred_element_type=jnp.float32)


# ---------------------------------------------------------------------------
# stride == 1: fully lane-dense path
# ---------------------------------------------------------------------------
def _kernel_dense(x_ref, *rest, has_expand, H, W, Cin, D, Cout, use_res):
    if has_expand:
        w1_ref, b1_ref, wd_ref, b2_ref, w3_ref, b3_ref, o_ref = rest
    else:
        wd_ref, b2_ref, w3_ref, b3_ref, o_ref = rest
    Nb = x_ref.shape[0]
    Wp = W + 2

    if has_expand:
        x = x_ref[...]                                    # (Nb, H, W*Cin)
        x2d = x.reshape(Nb * H, W * Cin)                  # leading-dim merge only
        # 1x1 expand as a block-diagonal matmul that directly produces the
        # width-padded lane-dense hidden activation (the pad columns have
        # zero weight AND zero bias, so they stay exactly 0 through ReLU6).
        h = jnp.dot(x2d.astype(jnp.bfloat16), w1_ref[...],
                    preferred_element_type=jnp.float32)   # (Nb*H, Wp*D)
        h = _relu6(h + b1_ref[...]).reshape(Nb, H, Wp * D)
        zrow = jnp.zeros((Nb, 1, Wp * D), jnp.float32)
        hp = jnp.concatenate([zrow, h, zrow], axis=1)     # (Nb, H+2, Wp*D)
    else:
        # expand_ratio == 1: the wrapper pre-padded x spatially, D == Cin.
        hp = x_ref[...]                                   # (Nb, H+2, Wp*D)

    # 3x3 depthwise conv (stride 1, pad 1) on the lane-dense slab:
    # one lane-offset slice per dx (hoisted), sublane-offset slices per dy,
    # 9 full-lane-width VPU multiply-adds.  Weights come pre-tiled as
    # (9, W*D) rows with BN already folded in.
    wd = wd_ref[...]                                      # (9, W*D)
    acc = jnp.zeros((Nb, H, W * D), jnp.float32)
    for dx in range(3):
        src = hp[:, :, dx * D:(dx + W) * D]               # (Nb, H+2, W*D)
        for dy in range(3):
            acc = acc + src[:, dy:dy + H, :] * wd[3 * dy + dx]
    d = _relu6(acc + b2_ref[...])                         # (Nb, H, W*D)

    # 1x1 project as a block-diagonal matmul -> lane-dense output directly.
    y = jnp.dot(d.reshape(Nb * H, W * D).astype(jnp.bfloat16), w3_ref[...],
                preferred_element_type=jnp.float32)
    y = (y + b3_ref[...]).reshape(Nb, H, W * Cout)

    if use_res:
        if has_expand:
            y = y + x                                      # Cin == Cout
        else:
            y = y + hp[:, 1:H + 1, D:(W + 1) * D]          # interior of padded x
    o_ref[...] = y


# ---------------------------------------------------------------------------
# stride == 2 (and fallback): channels-on-lanes path
# ---------------------------------------------------------------------------
def _kernel_std(x_ref, *rest, has_expand, stride, H, W, Ho, Wo, Cin, D, Cout,
                use_res):
    if has_expand:
        w1_ref, b1_ref, wd_ref, b2_ref, w3_ref, b3_ref, o_ref, hp_ref = rest
    else:
        wd_ref, b2_ref, w3_ref, b3_ref, o_ref, hp_ref = rest
    Nb = x_ref.shape[0]
    Hp, Wp = H + 2, W + 2

    x = x_ref[...]                                        # (Nb, H, W, Cin)
    if has_expand:
        h = _matmul(x.reshape(Nb * H * W, Cin), w1_ref[...])
        h = _relu6(h + b1_ref[...]).reshape(Nb, H, W, D)
    else:
        h = x                                             # D == Cin

    # Zero-padded activation in a persistent VMEM scratch: only the 1-px
    # borders are (re)zeroed each step (cheap), the interior is written once.
    # Borders are re-zeroed every step (not only at program_id==0) so the
    # kernel stays correct when the parallel grid axis is split across
    # TensorCores.
    hp_ref[:, 0:1, :, :] = jnp.zeros((Nb, 1, Wp, D), jnp.float32)
    hp_ref[:, Hp - 1:Hp, :, :] = jnp.zeros((Nb, 1, Wp, D), jnp.float32)
    hp_ref[:, :, 0:1, :] = jnp.zeros((Nb, Hp, 1, D), jnp.float32)
    hp_ref[:, :, Wp - 1:Wp, :] = jnp.zeros((Nb, Hp, 1, D), jnp.float32)
    hp_ref[:, 1:H + 1, 1:W + 1, :] = h

    # 3x3 depthwise conv evaluated only at output positions via (strided)
    # loads from the padded scratch -- no polyphase reshape / phase copies.
    wd = wd_ref[...]                                      # (9, D)
    acc = jnp.zeros((Nb, Ho, Wo, D), jnp.float32)
    for dy in range(3):
        for dx in range(3):
            if stride == 1:
                t = hp_ref[:, dy:dy + Ho, dx:dx + Wo, :]
            else:
                t = hp_ref[:, pl.ds(dy, Ho, stride), pl.ds(dx, Wo, stride), :]
            acc = acc + t * wd[3 * dy + dx]
    d = _relu6(acc + b2_ref[...])

    y = _matmul(d.reshape(Nb * Ho * Wo, D), w3_ref[...]) + b3_ref[...]
    y = y.reshape(Nb, Ho, Wo, Cout)
    if use_res:
        y = y + x
    o_ref[...] = y


# ---------------------------------------------------------------------------
# Parameter prep (eval-mode BN folded into the conv weights)
# ---------------------------------------------------------------------------
def make_params(key, inp, oup, expand_ratio):
    hidden = int(round(inp * expand_ratio))
    ks = jax.random.split(key, 6)
    eps = 1e-5

    def bn_fold(k, c):
        k1, k2, k3, k4 = jax.random.split(k, 4)
        gamma = 1.0 + 0.1 * jax.random.normal(k1, (c,), jnp.float32)
        beta = 0.1 * jax.random.normal(k2, (c,), jnp.float32)
        mean = 0.1 * jax.random.normal(k3, (c,), jnp.float32)
        var = jax.random.uniform(k4, (c,), jnp.float32, 0.5, 1.5)
        scale = gamma / jnp.sqrt(var + eps)
        bias = beta - mean * scale
        return scale, bias

    p = {}
    if expand_ratio != 1:
        w1 = 0.1 * jax.random.normal(ks[0], (inp, hidden), jnp.float32)
        s1, b1 = bn_fold(ks[1], hidden)
        p['w1'] = w1 * s1                      # (Cin, hidden), BN scale folded
        p['b1'] = b1                           # (hidden,)
    wd = 0.1 * jax.random.normal(ks[2], (3, 3, hidden), jnp.float32)
    s2, b2 = bn_fold(ks[3], hidden)
    p['wd'] = wd * s2                          # (3, 3, hidden)
    p['b2'] = b2
    w3 = 0.1 * jax.random.normal(ks[4], (hidden, oup), jnp.float32)
    s3, b3 = bn_fold(ks[5], oup)
    p['w3'] = w3 * s3                          # (hidden, oup)
    p['b3'] = b3
    return p


# ---------------------------------------------------------------------------
# Wrapper
# ---------------------------------------------------------------------------
def _round_up(x, m):
    return (x + m - 1) // m * m


def _padded_bytes(shape, dtype):
    """VMEM footprint with the minor dim padded to 128 lanes / second-minor
    to 8 sublanes (the thing the previous estimate under-counted)."""
    itemsize = jnp.dtype(dtype).itemsize
    if len(shape) == 0:
        return itemsize
    if len(shape) == 1:
        return 8 * _round_up(int(shape[0]), 128) * itemsize
    lane = _round_up(int(shape[-1]), 128)
    sub = _round_up(int(shape[-2]), 8)
    lead = 1
    for s in shape[:-2]:
        lead *= int(s)
    return lead * sub * lane * itemsize


def _pick_batch_block(N):
    """Images per grid step: keep the grid >= 2 steps when possible (both
    v7x TensorCores get work) while batching as much as that allows
    (amortizes per-step overhead and weight broadcasts)."""
    if N <= 1:
        return 1
    target = (N + 1) // 2
    for nb in range(target, 0, -1):
        if N % nb == 0:
            return nb
    return 1


def inverted_residual_block(x_nchw, params, *, inp, oup, stride, expand_ratio):
    hidden = int(round(inp * expand_ratio))
    use_res = (stride == 1 and inp == oup)
    has_expand = (expand_ratio != 1)

    x = jnp.transpose(x_nchw, (0, 2, 3, 1)).astype(jnp.float32)  # NCHW -> NHWC
    N, H, W, _ = x.shape
    Ho = (H - 1) // stride + 1
    Wo = (W - 1) // stride + 1
    Nb = _pick_batch_block(N)
    grid = (N // Nb,)
    Wp = W + 2

    # Lane-dense path only for stride 1 and while the block-diagonal 1x1
    # weights stay small (real 112x112 layers fall back; see TODO above).
    dense_path = stride == 1
    if dense_path:
        bd_bytes = 2 * (W * hidden) * (W * oup)
        if has_expand:
            bd_bytes += 2 * (W * inp) * (Wp * hidden)
        dense_path = bd_bytes <= (4 << 20)

    if dense_path:
        packed = []
        if has_expand:
            w1bd = jnp.kron(jnp.eye(W, dtype=jnp.float32), params['w1'])
            w1bd = jnp.pad(w1bd, ((0, 0), (hidden, hidden)))  # zero pad cols
            b1row = jnp.pad(jnp.tile(params['b1'], W), (hidden, hidden))
            packed += [w1bd.astype(jnp.bfloat16),
                       b1row.reshape(1, Wp * hidden)]
        wdrows = jnp.tile(params['wd'].reshape(9, hidden), (1, W))
        b2row = jnp.tile(params['b2'], W).reshape(1, W * hidden)
        w3bd = jnp.kron(jnp.eye(W, dtype=jnp.float32),
                        params['w3']).astype(jnp.bfloat16)
        b3row = jnp.tile(params['b3'], W).reshape(1, W * oup)
        packed += [wdrows, b2row, w3bd, b3row]

        if has_expand:
            x_in = x.reshape(N, H, W * inp)                 # lane-dense input
            in_block = (Nb, H, W * inp)
        else:
            # No expand conv to fold the spatial padding into: pre-pad once
            # in the wrapper so the kernel needs no in-kernel padding at all.
            x_in = jnp.pad(x, ((0, 0), (1, 1), (1, 1), (0, 0)))
            x_in = x_in.reshape(N, H + 2, Wp * inp)
            in_block = (Nb, H + 2, Wp * inp)

        kernel = functools.partial(
            _kernel_dense, has_expand=has_expand, H=H, W=W, Cin=inp,
            D=hidden, Cout=oup, use_res=use_res)
        out_shape = jax.ShapeDtypeStruct((N, H, W * oup), jnp.float32)
        out_block = (Nb, H, W * oup)
        out_specs = pl.BlockSpec(out_block, lambda n: (n, 0, 0))
        in_specs = [pl.BlockSpec(in_block, lambda n: (n, 0, 0))]
        scratch_shapes = ()
        temps = [(Nb, H + 2, Wp * hidden), (Nb, H + 2, Wp * hidden),
                 (Nb, H, W * hidden), (Nb, H, W * hidden),
                 (Nb, H, W * hidden), (Nb, H, W * oup)]
    else:
        packed = []
        if has_expand:
            packed += [params['w1'].astype(jnp.bfloat16),
                       params['b1'].reshape(1, hidden)]
        packed += [params['wd'].reshape(9, hidden),
                   params['b2'].reshape(1, hidden),
                   params['w3'].astype(jnp.bfloat16),
                   params['b3'].reshape(1, oup)]
        x_in = x
        in_block = (Nb, H, W, inp)
        kernel = functools.partial(
            _kernel_std, has_expand=has_expand, stride=stride, H=H, W=W,
            Ho=Ho, Wo=Wo, Cin=inp, D=hidden, Cout=oup, use_res=use_res)
        out_shape = jax.ShapeDtypeStruct((N, Ho, Wo, oup), jnp.float32)
        out_block = (Nb, Ho, Wo, oup)
        out_specs = pl.BlockSpec(out_block, lambda n: (n, 0, 0, 0))
        in_specs = [pl.BlockSpec(in_block, lambda n: (n, 0, 0, 0))]
        scratch_shapes = (pltpu.VMEM((Nb, H + 2, W + 2, hidden), jnp.float32),)
        temps = [(Nb, H, W, hidden), (Nb, H + 2, W + 2, hidden),
                 (Nb, Ho, Wo, hidden), (Nb, Ho, Wo, hidden),
                 (Nb, Ho, Wo, oup)]

    for arr in packed:
        in_specs.append(
            pl.BlockSpec(arr.shape, lambda n, _nd=arr.ndim: (0,) * _nd))

    # VMEM limit from (8,128)-padded sizes: double-buffered input/output
    # blocks + weights, plus the in-kernel f32 temporaries and the scratch.
    est = 2 * _padded_bytes(in_block, jnp.float32)
    est += 2 * _padded_bytes(out_block, jnp.float32)
    for arr in packed:
        est += 2 * _padded_bytes(arr.shape, arr.dtype)
    for t in temps:
        est += _padded_bytes(t, jnp.float32)
    if not dense_path:
        est += _padded_bytes((Nb, H + 2, W + 2, hidden), jnp.float32)
    try:
        phys = int(pltpu.get_tpu_info().vmem_capacity_bytes)
    except Exception:  # pragma: no cover - conservative fallback
        phys = 64 * 2**20
    vmem_limit = int(min(0.75 * phys, max(32 * 2**20, 2 * est)))

    out = pl.pallas_call(
        kernel,
        out_shape=out_shape,
        grid=grid,
        in_specs=in_specs,
        out_specs=out_specs,
        scratch_shapes=scratch_shapes,
        compiler_params=pltpu.CompilerParams(
            dimension_semantics=("parallel",),
            vmem_limit_bytes=vmem_limit),
    )(x_in, *packed)

    if dense_path:
        out = out.reshape(N, H, W, oup)
    return jnp.transpose(out, (0, 3, 1, 2))  # NHWC -> NCHW


# ---------------------------------------------------------------------------
# Pure-JAX reference (f32, same folded-BN parameters)
# ---------------------------------------------------------------------------
def ref_forward_nhwc(x, p, *, stride, expand_ratio, use_res, hidden):
    h = x
    if expand_ratio != 1:
        h = jnp.einsum('nhwc,cd->nhwd', h, p['w1'])
        h = jnp.clip(h + p['b1'], 0.0, 6.0)
    wd = p['wd'].reshape(3, 3, 1, hidden)          # HWIO, I = 1 (depthwise)
    dn = jax.lax.conv_dimension_numbers(h.shape, wd.shape,
                                        ('NHWC', 'HWIO', 'NHWC'))
    d = jax.lax.conv_general_dilated(h, wd, (stride, stride), ((1, 1), (1, 1)),
                                     dimension_numbers=dn,
                                     feature_group_count=hidden)
    d = jnp.clip(d + p['b2'], 0.0, 6.0)
    y = jnp.einsum('nhwc,cd->nhwd', d, p['w3']) + p['b3']
    if use_res:
        y = y + x
    return y


if __name__ == "__main__":
    configs = [
        dict(inp=4, oup=4, stride=1, expand_ratio=4, N=2, H=16, W=16),  # residual
        dict(inp=4, oup=8, stride=2, expand_ratio=4, N=2, H=16, W=16),  # downsample
        dict(inp=8, oup=8, stride=1, expand_ratio=1, N=2, H=16, W=16),  # no expansion
        dict(inp=4, oup=8, stride=2, expand_ratio=2, N=2, H=15, W=15),  # odd spatial
    ]

    key = jax.random.PRNGKey(0)
    for cfg in configs:
        key, kx, kp = jax.random.split(key, 3)
        inp, oup = cfg['inp'], cfg['oup']
        stride, er = cfg['stride'], cfg['expand_ratio']
        N, H, W = cfg['N'], cfg['H'], cfg['W']
        hidden = int(round(inp * er))

        x = jax.random.normal(kx, (N, inp, H, W), dtype=jnp.float32)  # NCHW
        params = make_params(kp, inp, oup, er)

        y = inverted_residual_block(x, params, inp=inp, oup=oup,
                                    stride=stride, expand_ratio=er)
        y = jax.block_until_ready(y)

        x_nhwc = jnp.transpose(x, (0, 2, 3, 1))
        y_ref = ref_forward_nhwc(x_nhwc, params, stride=stride,
                                 expand_ratio=er,
                                 use_res=(stride == 1 and inp == oup),
                                 hidden=hidden)
        y_ref = jnp.transpose(y_ref, (0, 3, 1, 2))

        Ho = (H - 1) // stride + 1
        Wo = (W - 1) // stride + 1
        assert y.shape == (N, oup, Ho, Wo), (y.shape, cfg)
        err = float(jnp.max(jnp.abs(y - y_ref)))
        # bf16 MXU inputs (f32 accumulation) vs. the pure-f32 reference:
        # worst-case |err| ~ hidden * |w3| * 6 * 2^-9 ~ 3e-2 at these shapes.
        assert err < 4e-2, f"max err {err} for cfg {cfg}"

    print("KERNEL_OK")
</pallas_src>

<mosaic_0001>
module attributes {stable_mosaic.version = 11 : i64} {
  func.func @_kernel_dense(%arg0: i32, %arg1: memref<1x16x64xf32, #tpu.memory_space<vmem>>, %arg2: memref<64x288xbf16, #tpu.memory_space<vmem>>, %arg3: memref<1x288xf32, #tpu.memory_space<vmem>>, %arg4: memref<9x256xf32, #tpu.memory_space<vmem>>, %arg5: memref<1x256xf32, #tpu.memory_space<vmem>>, %arg6: memref<256x64xbf16, #tpu.memory_space<vmem>>, %arg7: memref<1x64xf32, #tpu.memory_space<vmem>>, %arg8: memref<1x16x64xf32, #tpu.memory_space<vmem>>) attributes {dimension_semantics = [#tpu.dimension_semantics<parallel>], iteration_bounds = array<i64: 2>, scalar_prefetch = 0 : i64, scratch_operands = 0 : i64, tpu.core_type = #tpu.core_type<tc>, window_params = [{transform_indices = @transform_0, window_bounds = array<i64: 1, 16, 64>}, {pipeline_mode = #tpu.pipeline_mode<synchronous>, transform_indices = @transform_1, window_bounds = array<i64: 64, 288>}, {pipeline_mode = #tpu.pipeline_mode<synchronous>, transform_indices = @transform_2, window_bounds = array<i64: 1, 288>}, {pipeline_mode = #tpu.pipeline_mode<synchronous>, transform_indices = @transform_3, window_bounds = array<i64: 9, 256>}, {pipeline_mode = #tpu.pipeline_mode<synchronous>, transform_indices = @transform_4, window_bounds = array<i64: 1, 256>}, {pipeline_mode = #tpu.pipeline_mode<synchronous>, transform_indices = @transform_5, window_bounds = array<i64: 256, 64>}, {pipeline_mode = #tpu.pipeline_mode<synchronous>, transform_indices = @transform_6, window_bounds = array<i64: 1, 64>}, {transform_indices = @transform_7, window_bounds = array<i64: 1, 16, 64>}]} {
    %c0 = arith.constant 0 : index
    %c0_0 = arith.constant 0 : index
    %c0_1 = arith.constant 0 : index
    %0 = vector.load %arg1[%c0, %c0_0, %c0_1] : memref<1x16x64xf32, #tpu.memory_space<vmem>>, vector<1x16x64xf32>
    %1 = vector.shape_cast %0 : vector<1x16x64xf32> to vector<16x64xf32>
    %2 = arith.truncf %1 : vector<16x64xf32> to vector<16x64xbf16>
    %c0_2 = arith.constant 0 : index
    %c0_3 = arith.constant 0 : index
    %3 = vector.load %arg2[%c0_2, %c0_3] : memref<64x288xbf16, #tpu.memory_space<vmem>>, vector<64x288xbf16>
    %cst = arith.constant dense<0.000000e+00> : vector<16x288xf32>
    %4 = tpu.matmul %2, %3, %cst {dimension_numbers = #tpu.dot_dimension_numbers<[1], [0], [0], [1], [0, 0, 1, 1], [], []>} : vector<16x64xbf16>, vector<64x288xbf16>, vector<16x288xf32> -> vector<16x288xf32>
    %c0_4 = arith.constant 0 : index
    %c0_5 = arith.constant 0 : index
    %5 = vector.load %arg3[%c0_4, %c0_5] : memref<1x288xf32, #tpu.memory_space<vmem>>, vector<1x288xf32>
    %6 = vector.broadcast %5 : vector<1x288xf32> to vector<16x288xf32>
    %7 = arith.addf %4, %6 : vector<16x288xf32>
    %cst_6 = arith.constant 0.000000e+00 : f32
    %8 = vector.broadcast %cst_6 : f32 to vector<16x288xf32>
    %9 = arith.maximumf %7, %8 : vector<16x288xf32>
    %cst_7 = arith.constant 6.000000e+00 : f32
    %10 = vector.broadcast %cst_7 : f32 to vector<16x288xf32>
    %11 = arith.minimumf %9, %10 : vector<16x288xf32>
    %12 = vector.shape_cast %11 : vector<16x288xf32> to vector<1x16x288xf32>
    %cst_8 = arith.constant 0.000000e+00 : f32
    %13 = vector.broadcast %cst_8 : f32 to vector<1x1x288xf32>
    %14 = tpu.concatenate %13, %12, %13 in 1 : vector<1x1x288xf32>, vector<1x16x288xf32>, vector<1x1x288xf32> -> vector<1x18x288xf32>
    %c0_9 = arith.constant 0 : index
    %c0_10 = arith.constant 0 : index
    %15 = vector.load %arg4[%c0_9, %c0_10] : memref<9x256xf32, #tpu.memory_space<vmem>>, vector<9x256xf32>
    %cst_11 = arith.constant 0.000000e+00 : f32
    %16 = vector.broadcast %cst_11 : f32 to vector<1x16x256xf32>
    %17 = vector.extract_strided_slice %14 {offsets = [0, 0, 0], sizes = [1, 18, 256], strides = [1, 1, 1]} : vector<1x18x288xf32> to vector<1x18x256xf32>
    %18 = vector.extract_strided_slice %17 {offsets = [0, 0, 0], sizes = [1, 16, 256], strides = [1, 1, 1]} : vector<1x18x256xf32> to vector<1x16x256xf32>
    %19 = vector.extract_strided_slice %15 {offsets = [0, 0], sizes = [1, 256], strides = [1, 1]} : vector<9x256xf32> to vector<1x256xf32>
    %20 = vector.shape_cast %19 : vector<1x256xf32> to vector<256xf32>
    %21 = vector.shape_cast %20 : vector<256xf32> to vector<1x1x256xf32>
    %22 = vector.broadcast %21 : vector<1x1x256xf32> to vector<1x16x256xf32>
    %23 = arith.mulf %18, %22 : vector<1x16x256xf32>
    %24 = arith.addf %16, %23 : vector<1x16x256xf32>
    %25 = vector.extract_strided_slice %17 {offsets = [0, 1, 0], sizes = [1, 16, 256], strides = [1, 1, 1]} : vector<1x18x256xf32> to vector<1x16x256xf32>
    %26 = vector.extract_strided_slice %15 {offsets = [3, 0], sizes = [1, 256], strides = [1, 1]} : vector<9x256xf32> to vector<1x256xf32>
    %27 = vector.shape_cast %26 : vector<1x256xf32> to vector<256xf32>
    %28 = vector.shape_cast %27 : vector<256xf32> to vector<1x1x256xf32>
    %29 = vector.broadcast %28 : vector<1x1x256xf32> to vector<1x16x256xf32>
    %30 = arith.mulf %25, %29 : vector<1x16x256xf32>
    %31 = arith.addf %24, %30 : vector<1x16x256xf32>
    %32 = vector.extract_strided_slice %17 {offsets = [0, 2, 0], sizes = [1, 16, 256], strides = [1, 1, 1]} : vector<1x18x256xf32> to vector<1x16x256xf32>
    %33 = vector.extract_strided_slice %15 {offsets = [6, 0], sizes = [1, 256], strides = [1, 1]} : vector<9x256xf32> to vector<1x256xf32>
    %34 = vector.shape_cast %33 : vector<1x256xf32> to vector<256xf32>
    %35 = vector.shape_cast %34 : vector<256xf32> to vector<1x1x256xf32>
    %36 = vector.broadcast %35 : vector<1x1x256xf32> to vector<1x16x256xf32>
    %37 = arith.mulf %32, %36 : vector<1x16x256xf32>
    %38 = arith.addf %31, %37 : vector<1x16x256xf32>
    %39 = vector.extract_strided_slice %14 {offsets = [0, 0, 16], sizes = [1, 18, 256], strides = [1, 1, 1]} : vector<1x18x288xf32> to vector<1x18x256xf32>
    %40 = vector.extract_strided_slice %39 {offsets = [0, 0, 0], sizes = [1, 16, 256], strides = [1, 1, 1]} : vector<1x18x256xf32> to vector<1x16x256xf32>
    %41 = vector.extract_strided_slice %15 {offsets = [1, 0], sizes = [1, 256], strides = [1, 1]} : vector<9x256xf32> to vector<1x256xf32>
    %42 = vector.shape_cast %41 : vector<1x256xf32> to vector<256xf32>
    %43 = vector.shape_cast %42 : vector<256xf32> to vector<1x1x256xf32>
    %44 = vector.broadcast %43 : vector<1x1x256xf32> to vector<1x16x256xf32>
    %45 = arith.mulf %40, %44 : vector<1x16x256xf32>
    %46 = arith.addf %38, %45 : vector<1x16x256xf32>
    %47 = vector.extract_strided_slice %39 {offsets = [0, 1, 0], sizes = [1, 16, 256], strides = [1, 1, 1]} : vector<1x18x256xf32> to vector<1x16x256xf32>
    %48 = vector.extract_strided_slice %15 {offsets = [4, 0], sizes = [1, 256], strides = [1, 1]} : vector<9x256xf32> to vector<1x256xf32>
    %49 = vector.shape_cast %48 : vector<1x256xf32> to vector<256xf32>
    %50 = vector.shape_cast %49 : vector<256xf32> to vector<1x1x256xf32>
    %51 = vector.broadcast %50 : vector<1x1x256xf32> to vector<1x16x256xf32>
    %52 = arith.mulf %47, %51 : vector<1x16x256xf32>
    %53 = arith.addf %46, %52 : vector<1x16x256xf32>
    %54 = vector.extract_strided_slice %39 {offsets = [0, 2, 0], sizes = [1, 16, 256], strides = [1, 1, 1]} : vector<1x18x256xf32> to vector<1x16x256xf32>
    %55 = vector.extract_strided_slice %15 {offsets = [7, 0], sizes = [1, 256], strides = [1, 1]} : vector<9x256xf32> to vector<1x256xf32>
    %56 = vector.shape_cast %55 : vector<1x256xf32> to vector<256xf32>
    %57 = vector.shape_cast %56 : vector<256xf32> to vector<1x1x256xf32>
    %58 = vector.broadcast %57 : vector<1x1x256xf32> to vector<1x16x256xf32>
    %59 = arith.mulf %54, %58 : vector<1x16x256xf32>
    %60 = arith.addf %53, %59 : vector<1x16x256xf32>
    %61 = vector.extract_strided_slice %14 {offsets = [0, 0, 32], sizes = [1, 18, 256], strides = [1, 1, 1]} : vector<1x18x288xf32> to vector<1x18x256xf32>
    %62 = vector.extract_strided_slice %61 {offsets = [0, 0, 0], sizes = [1, 16, 256], strides = [1, 1, 1]} : vector<1x18x256xf32> to vector<1x16x256xf32>
    %63 = vector.extract_strided_slice %15 {offsets = [2, 0], sizes = [1, 256], strides = [1, 1]} : vector<9x256xf32> to vector<1x256xf32>
    %64 = vector.shape_cast %63 : vector<1x256xf32> to vector<256xf32>
    %65 = vector.shape_cast %64 : vector<256xf32> to vector<1x1x256xf32>
    %66 = vector.broadcast %65 : vector<1x1x256xf32> to vector<1x16x256xf32>
    %67 = arith.mulf %62, %66 : vector<1x16x256xf32>
    %68 = arith.addf %60, %67 : vector<1x16x256xf32>
    %69 = vector.extract_strided_slice %61 {offsets = [0, 1, 0], sizes = [1, 16, 256], strides = [1, 1, 1]} : vector<1x18x256xf32> to vector<1x16x256xf32>
    %70 = vector.extract_strided_slice %15 {offsets = [5, 0], sizes = [1, 256], strides = [1, 1]} : vector<9x256xf32> to vector<1x256xf32>
    %71 = vector.shape_cast %70 : vector<1x256xf32> to vector<256xf32>
    %72 = vector.shape_cast %71 : vector<256xf32> to vector<1x1x256xf32>
    %73 = vector.broadcast %72 : vector<1x1x256xf32> to vector<1x16x256xf32>
    %74 = arith.mulf %69, %73 : vector<1x16x256xf32>
    %75 = arith.addf %68, %74 : vector<1x16x256xf32>
    %76 = vector.extract_strided_slice %61 {offsets = [0, 2, 0], sizes = [1, 16, 256], strides = [1, 1, 1]} : vector<1x18x256xf32> to vector<1x16x256xf32>
    %77 = vector.extract_strided_slice %15 {offsets = [8, 0], sizes = [1, 256], strides = [1, 1]} : vector<9x256xf32> to vector<1x256xf32>
    %78 = vector.shape_cast %77 : vector<1x256xf32> to vector<256xf32>
    %79 = vector.shape_cast %78 : vector<256xf32> to vector<1x1x256xf32>
    %80 = vector.broadcast %79 : vector<1x1x256xf32> to vector<1x16x256xf32>
    %81 = arith.mulf %76, %80 : vector<1x16x256xf32>
    %82 = arith.addf %75, %81 : vector<1x16x256xf32>
    %c0_12 = arith.constant 0 : index
    %c0_13 = arith.constant 0 : index
    %83 = vector.load %arg5[%c0_12, %c0_13] : memref<1x256xf32, #tpu.memory_space<vmem>>, vector<1x256xf32>
    %84 = vector.shape_cast %83 : vector<1x256xf32> to vector<1x1x256xf32>
    %85 = vector.broadcast %84 : vector<1x1x256xf32> to vector<1x16x256xf32>
    %86 = arith.addf %82, %85 : vector<1x16x256xf32>
    %cst_14 = arith.constant 0.000000e+00 : f32
    %87 = vector.broadcast %cst_14 : f32 to vector<1x16x256xf32>
    %88 = arith.maximumf %86, %87 : vector<1x16x256xf32>
    %cst_15 = arith.constant 6.000000e+00 : f32
    %89 = vector.broadcast %cst_15 : f32 to vector<1x16x256xf32>
    %90 = arith.minimumf %88, %89 : vector<1x16x256xf32>
    %91 = vector.shape_cast %90 : vector<1x16x256xf32> to vector<16x256xf32>
    %92 = arith.truncf %91 : vector<16x256xf32> to vector<16x256xbf16>
    %c0_16 = arith.constant 0 : index
    %c0_17 = arith.constant 0 : index
    %93 = vector.load %arg6[%c0_16, %c0_17] : memref<256x64xbf16, #tpu.memory_space<vmem>>, vector<256x64xbf16>
    %cst_18 = arith.constant dense<0.000000e+00> : vector<16x64xf32>
    %94 = tpu.matmul %92, %93, %cst_18 {dimension_numbers = #tpu.dot_dimension_numbers<[1], [0], [0], [1], [0, 0, 1, 1], [], []>} : vector<16x256xbf16>, vector<256x64xbf16>, vector<16x64xf32> -> vector<16x64xf32>
    %c0_19 = arith.constant 0 : index
    %c0_20 = arith.constant 0 : index
    %95 = vector.load %arg7[%c0_19, %c0_20] : memref<1x64xf32, #tpu.memory_space<vmem>>, vector<1x64xf32>
    %96 = vector.broadcast %95 : vector<1x64xf32> to vector<16x64xf32>
    %97 = arith.addf %94, %96 : vector<16x64xf32>
    %98 = vector.shape_cast %97 : vector<16x64xf32> to vector<1x16x64xf32>
    %99 = arith.addf %98, %0 : vector<1x16x64xf32>
    %c0_21 = arith.constant 0 : index
    %c0_22 = arith.constant 0 : index
    %c0_23 = arith.constant 0 : index
    %100 = vector.load %arg8[%c0_21, %c0_22, %c0_23] : memref<1x16x64xf32, #tpu.memory_space<vmem>>, vector<1x16x64xf32>
    tpu.vector_store %arg8[%c0_21, %c0_22, %c0_23], %99 {strides = array<i32>} : memref<1x16x64xf32, #tpu.memory_space<vmem>>, vector<1x16x64xf32>,
    return
  }
  func.func @transform_0(%arg0: i32) -> (i32, i32, i32) {
    %c0_i32 = arith.constant 0 : i32
    %c0_i32_0 = arith.constant 0 : i32
    %c0_i32_1 = arith.constant 0 : i32
    return %arg0, %c0_i32, %c0_i32_0 : i32, i32, i32
  }
  func.func @transform_1(%arg0: i32) -> (i32, i32) {
    %c0_i32 = arith.constant 0 : i32
    %c0_i32_0 = arith.constant 0 : i32
    %c0_i32_1 = arith.constant 0 : i32
    return %c0_i32, %c0_i32_0 : i32, i32
  }
  func.func @transform_2(%arg0: i32) -> (i32, i32) {
    %c0_i32 = arith.constant 0 : i32
    %c0_i32_0 = arith.constant 0 : i32
    %c0_i32_1 = arith.constant 0 : i32
    return %c0_i32, %c0_i32_0 : i32, i32
  }
  func.func @transform_3(%arg0: i32) -> (i32, i32) {
    %c0_i32 = arith.constant 0 : i32
    %c0_i32_0 = arith.constant 0 : i32
    %c0_i32_1 = arith.constant 0 : i32
    return %c0_i32, %c0_i32_0 : i32, i32
  }
  func.func @transform_4(%arg0: i32) -> (i32, i32) {
    %c0_i32 = arith.constant 0 : i32
    %c0_i32_0 = arith.constant 0 : i32
    %c0_i32_1 = arith.constant 0 : i32
    return %c0_i32, %c0_i32_0 : i32, i32
  }
  func.func @transform_5(%arg0: i32) -> (i32, i32) {
    %c0_i32 = arith.constant 0 : i32
    %c0_i32_0 = arith.constant 0 : i32
    %c0_i32_1 = arith.constant 0 : i32
    return %c0_i32, %c0_i32_0 : i32, i32
  }
  func.func @transform_6(%arg0: i32) -> (i32, i32) {
    %c0_i32 = arith.constant 0 : i32
    %c0_i32_0 = arith.constant 0 : i32
    %c0_i32_1 = arith.constant 0 : i32
    return %c0_i32, %c0_i32_0 : i32, i32
  }
  func.func @transform_7(%arg0: i32) -> (i32, i32, i32) {
    %c0_i32 = arith.constant 0 : i32
    %c0_i32_0 = arith.constant 0 : i32
    %c0_i32_1 = arith.constant 0 : i32
    return %arg0, %c0_i32, %c0_i32_0 : i32, i32, i32
  }
}

</mosaic_0001>

<llo_original>
// kernel: tpu_custom_call.1
$region0: #{tpu_custom_call.1}
  #allocation0 [shape = 'u32[]', space=smem, size = 0x4, offset = 0x4, fixed_abs, tag = 'smem constant byte address 0x4 - core index']
  #allocation1 [shape = 'u32[144,128]{1,0:T(1,128)}', space=vmem, size = 0x12000, scoped, tag = 'internal scratch']
  %s0 = inlined_call_operand.vmem [shape: f32[2,16,64], index: 0, kind: input, shape index: {}]
  %s1 = inlined_call_operand.vmem [shape: bf16[64,288], index: 1, kind: input, shape index: {}]
  %s2 = inlined_call_operand.vmem [shape: f32[1,288], index: 2, kind: input, shape index: {}]
  %s3 = inlined_call_operand.vmem [shape: f32[9,256], index: 3, kind: input, shape index: {}]
  %s4 = inlined_call_operand.vmem [shape: f32[1,256], index: 4, kind: input, shape index: {}]
  %s5 = inlined_call_operand.vmem [shape: bf16[256,64], index: 5, kind: input, shape index: {}]
  %s6 = inlined_call_operand.vmem [shape: f32[1,64], index: 6, kind: input, shape index: {}]
  %s7 = inlined_call_operand.hbm [shape: f32[2,16,64], index: 7, kind: output, shape index: {}]
  %s8 = sld [smem:[#allocation0]]
  $region61: #{tpu_custom_call.1} parent=0
    _
  %s10 = ssub.s32 1, %s8
  %s11 = scalar_select 0, %s10, %s8
  $region1: #{tpu_custom_call.1} parent=0
    #allocation2 [shape = 'u8[16384]{0}', space=vmem, size = 0x4000, scoped, tag = 'output window, operand 0']
    #allocation3 [shape = 's32[2]{0}', space=sflag, size = 0x8, scoped, tag = 'scoped memory for tpu_custom_call.1']
    %12 = vsyncpa [#allocation3], 0
    %s13 = scalar_lea.sflag [#allocation3], 1
    %14 = vsyncpa %s13, 0
    loop: start=0, step=1, limit=4
    $region2: #{tpu_custom_call.1} parent=1 // loop_pre_header
      _
    $region3: #{tpu_custom_call.1} parent=1 // loop_header
      %s16 = sphi 0, %s20
      %p17 = scmp.ge.s32.totalorder %s16, 4
      %s26 = sphi 0, %s28
      %s29 = sphi 0, %s26
      %s30 = sphi 0, %s29
      %s46 = sphi 0, %s30
      %s50 = sphi 0, %s50
      %s52 = sphi 0, %s50
      %s53 = sphi 0, %s52
      %s67 = sphi 0, %s53
      %s71 = sphi 0, %s71
      %s73 = sphi 0, %s71
      %s74 = sphi 0, %s73
      %s88 = sphi 0, %s74
      %s92 = sphi 0, %s92
      %s94 = sphi 0, %s92
      %s95 = sphi 0, %s94
      %s109 = sphi 0, %s95
      %s113 = sphi 0, %s113
      %s115 = sphi 0, %s113
      %s116 = sphi 0, %s115
      %s130 = sphi 0, %s116
      %s134 = sphi 0, %s134
      %s136 = sphi 0, %s134
      %s137 = sphi 0, %s136
      %s151 = sphi 0, %s137
      %s155 = sphi 0, %s155
      %s157 = sphi 0, %s155
      %s158 = sphi 0, %s157
      %s172 = sphi 0, %s158
      %s178 = sphi 0, %s180
      %s181 = sphi 0, %s178
      %s182 = sphi 0, %s181
      %s198 = sphi 0, %s182
    $region4: #{tpu_custom_call.1} parent=1 // loop_header_branch
      %19 = sbr.rel (%p17) target = $region8
    $region5: #{tpu_custom_call.1} parent=1 // loop_body
      %s21 = ssub.s32 %s16, 1
      %s22 = ssub.s32 %s16, 2
      %s23 = sadd.s32 %s16, 1
      %s24 = ssub.s32 %s16, %s23
      %p25 = scmp.eq.s32.totalorder %s24, 0
      %s27 = sadd.s32 %s26, 1
      %s28 = scalar_select %p25, %s26, %s27
      %p31 = pneg %p25
      %p32 = scmp.eq.s32.totalorder %s16, 1
      %p33 = por %p31, %p32
      %p34 = scmp.ne.s32.totalorder %s26, %s29
      %p35 = scmp.eq.s32.totalorder %s16, 0
      %p36 = por %p34, %p35
      %p37 = scmp.ne.s32.totalorder %s26, %s29
      %p38 = scmp.eq.s32.totalorder %s21, 1
      %p39 = por %p37, %p38
      %p40 = scmp.ne.s32.totalorder %s29, %s30
      %p41 = scmp.eq.s32.totalorder %s21, 0
      %p42 = por %p40, %p41
      %p43 = scmp.ne.s32.totalorder %s29, %s30
      %p44 = scmp.eq.s32.totalorder %s22, 1
      %p45 = por %p43, %p44
      %p47 = scmp.ne.s32.totalorder %s30, %s46
      %p48 = scmp.eq.s32.totalorder %s22, 0
      %p49 = por %p47, %p48
      %s51 = sadd.s32 %s50, 1
      %p54 = scmp.eq.s32.totalorder %s16, 1
      %p55 = scmp.ne.s32.totalorder %s50, %s52
      %p56 = scmp.eq.s32.totalorder %s16, 0
      %p57 = por %p55, %p56
      %p58 = scmp.ne.s32.totalorder %s50, %s52
      %p59 = scmp.eq.s32.totalorder %s21, 1
      %p60 = por %p58, %p59
      %p61 = scmp.ne.s32.totalorder %s52, %s53
      %p62 = scmp.eq.s32.totalorder %s21, 0
      %p63 = por %p61, %p62
      %p64 = scmp.ne.s32.totalorder %s52, %s53
      %p65 = scmp.eq.s32.totalorder %s22, 1
      %p66 = por %p64, %p65
      %p68 = scmp.ne.s32.totalorder %s53, %s67
      %p69 = scmp.eq.s32.totalorder %s22, 0
      %p70 = por %p68, %p69
      %s72 = sadd.s32 %s71, 1
      %p75 = scmp.eq.s32.totalorder %s16, 1
      %p76 = scmp.ne.s32.totalorder %s71, %s73
      %p77 = scmp.eq.s32.totalorder %s16, 0
      %p78 = por %p76, %p77
      %p79 = scmp.ne.s32.totalorder %s71, %s73
      %p80 = scmp.eq.s32.totalorder %s21, 1
      %p81 = por %p79, %p80
      %p82 = scmp.ne.s32.totalorder %s73, %s74
      %p83 = scmp.eq.s32.totalorder %s21, 0
      %p84 = por %p82, %p83
      %p85 = scmp.ne.s32.totalorder %s73, %s74
      %p86 = scmp.eq.s32.totalorder %s22, 1
      %p87 = por %p85, %p86
      %p89 = scmp.ne.s32.totalorder %s74, %s88
      %p90 = scmp.eq.s32.totalorder %s22, 0
      %p91 = por %p89, %p90
      %s93 = sadd.s32 %s92, 1
      %p96 = scmp.eq.s32.totalorder %s16, 1
      %p97 = scmp.ne.s32.totalorder %s92, %s94
      %p98 = scmp.eq.s32.totalorder %s16, 0
      %p99 = por %p97, %p98
      %p100 = scmp.ne.s32.totalorder %s92, %s94
      %p101 = scmp.eq.s32.totalorder %s21, 1
      %p102 = por %p100, %p101
      %p103 = scmp.ne.s32.totalorder %s94, %s95
      %p104 = scmp.eq.s32.totalorder %s21, 0
      %p105 = por %p103, %p104
      %p106 = scmp.ne.s32.totalorder %s94, %s95
      %p107 = scmp.eq.s32.totalorder %s22, 1
      %p108 = por %p106, %p107
      %p110 = scmp.ne.s32.totalorder %s95, %s109
      %p111 = scmp.eq.s32.totalorder %s22, 0
      %p112 = por %p110, %p111
      %s114 = sadd.s32 %s113, 1
      %p117 = scmp.eq.s32.totalorder %s16, 1
      %p118 = scmp.ne.s32.totalorder %s113, %s115
      %p119 = scmp.eq.s32.totalorder %s16, 0
      %p120 = por %p118, %p119
      %p121 = scmp.ne.s32.totalorder %s113, %s115
      %p122 = scmp.eq.s32.totalorder %s21, 1
      %p123 = por %p121, %p122
      %p124 = scmp.ne.s32.totalorder %s115, %s116
      %p125 = scmp.eq.s32.totalorder %s21, 0
      %p126 = por %p124, %p125
      %p127 = scmp.ne.s32.totalorder %s115, %s116
      %p128 = scmp.eq.s32.totalorder %s22, 1
      %p129 = por %p127, %p128
      %p131 = scmp.ne.s32.totalorder %s116, %s130
      %p132 = scmp.eq.s32.totalorder %s22, 0
      %p133 = por %p131, %p132
      %s135 = sadd.s32 %s134, 1
      %p138 = scmp.eq.s32.totalorder %s16, 1
      %p139 = scmp.ne.s32.totalorder %s134, %s136
      %p140 = scmp.eq.s32.totalorder %s16, 0
      %p141 = por %p139, %p140
      %p142 = scmp.ne.s32.totalorder %s134, %s136
      %p143 = scmp.eq.s32.totalorder %s21, 1
      %p144 = por %p142, %p143
      %p145 = scmp.ne.s32.totalorder %s136, %s137
      %p146 = scmp.eq.s32.totalorder %s21, 0
      %p147 = por %p145, %p146
      %p148 = scmp.ne.s32.totalorder %s136, %s137
      %p149 = scmp.eq.s32.totalorder %s22, 1
      %p150 = por %p148, %p149
      %p152 = scmp.ne.s32.totalorder %s137, %s151
      %p153 = scmp.eq.s32.totalorder %s22, 0
      %p154 = por %p152, %p153
      %s156 = sadd.s32 %s155, 1
      %p159 = scmp.eq.s32.totalorder %s16, 1
      %p160 = scmp.ne.s32.totalorder %s155, %s157
      %p161 = scmp.eq.s32.totalorder %s16, 0
      %p162 = por %p160, %p161
      %p163 = scmp.ne.s32.totalorder %s155, %s157
      %p164 = scmp.eq.s32.totalorder %s21, 1
      %p165 = por %p163, %p164
      %p166 = scmp.ne.s32.totalorder %s157, %s158
      %p167 = scmp.eq.s32.totalorder %s21, 0
      %p168 = por %p166, %p167
      %p169 = scmp.ne.s32.totalorder %s157, %s158
      %p170 = scmp.eq.s32.totalorder %s22, 1
      %p171 = por %p169, %p170
      %p173 = scmp.ne.s32.totalorder %s158, %s172
      %p174 = scmp.eq.s32.totalorder %s22, 0
      %p175 = por %p173, %p174
      %s176 = ssub.s32 %s16, %s23
      %p177 = scmp.eq.s32.totalorder %s176, 0
      %s179 = sadd.s32 %s178, 1
      %s180 = scalar_select %p177, %s178, %s179
      %p183 = pneg %p177
      %p184 = scmp.eq.s32.totalorder %s16, 1
      %p185 = por %p183, %p184
      %p186 = scmp.ne.s32.totalorder %s178, %s181
      %p187 = scmp.eq.s32.totalorder %s16, 0
      %p188 = por %p186, %p187
      %p189 = scmp.ne.s32.totalorder %s178, %s181
      %p190 = scmp.eq.s32.totalorder %s21, 1
      %p191 = por %p189, %p190
      %p192 = scmp.ne.s32.totalorder %s181, %s182
      %p193 = scmp.eq.s32.totalorder %s21, 0
      %p194 = por %p192, %p193
      %p195 = scmp.ne.s32.totalorder %s181, %s182
      %p196 = scmp.eq.s32.totalorder %s22, 1
      %p197 = por %p195, %p196
      %p199 = scmp.ne.s32.totalorder %s182, %s198
      %p200 = scmp.eq.s32.totalorder %s22, 0
      %p201 = por %p199, %p200
      %p202 = scmp.le.s32.totalorder 1, %s16
      %p203 = scmp.lt.s32.totalorder %s16, 3
      %p204 = pnand %p202, %p203
      %p205 = pneg %p204
      // Predicated region
      $region9: #{tpu_custom_call.1} parent=5 // pred_check
        _
      $region10: #{tpu_custom_call.1} parent=5 // pred_check_branch
        %207 = sbr.rel (%p204) target = $region12
      $region11: #{tpu_custom_call.1} parent=5 // pred_region
        %s208 = ssub.s32 %s16, 1
        // Predicated region
        $region13: #{tpu_custom_call.1} parent=11 // pred_check
          %p209 = pneg %p63
        $region14: #{tpu_custom_call.1} parent=11 // pred_check_branch
          %211 = sbr.rel (%p209) target = $region16
        $region15: #{tpu_custom_call.1} parent=11 // pred_region
          _
        $region16: #{tpu_custom_call.1} parent=11 // pred_fallthru
          _
        // Predicated region
        $region17: #{tpu_custom_call.1} parent=11 // pred_check
          %p212 = pneg %p84
        $region18: #{tpu_custom_call.1} parent=11 // pred_check_branch
          %214 = sbr.rel (%p212) target = $region20
        $region19: #{tpu_custom_call.1} parent=11 // pred_region
          _
        $region20: #{tpu_custom_call.1} parent=11 // pred_fallthru
          _
        // Predicated region
        $region21: #{tpu_custom_call.1} parent=11 // pred_check
          %p215 = pneg %p105
        $region22: #{tpu_custom_call.1} parent=11 // pred_check_branch
          %217 = sbr.rel (%p215) target = $region24
        $region23: #{tpu_custom_call.1} parent=11 // pred_region
          _
        $region24: #{tpu_custom_call.1} parent=11 // pred_fallthru
          _
        // Predicated region
        $region25: #{tpu_custom_call.1} parent=11 // pred_check
          %p218 = pneg %p126
        $region26: #{tpu_custom_call.1} parent=11 // pred_check_branch
          %220 = sbr.rel (%p218) target = $region28
        $region27: #{tpu_custom_call.1} parent=11 // pred_region
          _
        $region28: #{tpu_custom_call.1} parent=11 // pred_fallthru
          _
        // Predicated region
        $region29: #{tpu_custom_call.1} parent=11 // pred_check
          %p221 = pneg %p147
        $region30: #{tpu_custom_call.1} parent=11 // pred_check_branch
          %223 = sbr.rel (%p221) target = $region32
        $region31: #{tpu_custom_call.1} parent=11 // pred_region
          _
        $region32: #{tpu_custom_call.1} parent=11 // pred_fallthru
          _
        // Predicated region
        $region33: #{tpu_custom_call.1} parent=11 // pred_check
          %p224 = pneg %p168
        $region34: #{tpu_custom_call.1} parent=11 // pred_check_branch
          %226 = sbr.rel (%p224) target = $region36
        $region35: #{tpu_custom_call.1} parent=11 // pred_region
          _
        $region36: #{tpu_custom_call.1} parent=11 // pred_fallthru
          _
      $region12: #{tpu_custom_call.1} parent=5 // pred_fallthru
        _
      %p227 = scmp.lt.s32.totalorder %s16, 2
      // Predicated region
      $region37: #{tpu_custom_call.1} parent=5 // pred_check
        %p228 = pneg %p227
      $region38: #{tpu_custom_call.1} parent=5 // pred_check_branch
        %230 = sbr.rel (%p228) target = $region40
      $region39: #{tpu_custom_call.1} parent=5 // pred_region
        // Predicated region
        $region41: #{tpu_custom_call.1} parent=39 // pred_check
          %p231 = pneg %p36
        $region42: #{tpu_custom_call.1} parent=39 // pred_check_branch
          %233 = sbr.rel (%p231) target = $region44
        $region43: #{tpu_custom_call.1} parent=39 // pred_region
          %p234 = scmp.lt.s32.totalorder %s16, 1
          %s235 = scalar_select %p234, %s16, 1
          %s236 = smul.addr %s235, 2
          %s237 = smul.addr %s236, 8
          %s238 = scalar_lea.vmem %s0, %s237
        $region44: #{tpu_custom_call.1} parent=39 // pred_fallthru
          _
      $region40: #{tpu_custom_call.1} parent=5 // pred_fallthru
        _
      %p239 = scmp.le.s32.totalorder 1, %s16
      %p240 = scmp.lt.s32.totalorder %s16, 3
      %p241 = pnand %p239, %p240
      %p242 = pneg %p241
      // Predicated region
      $region45: #{tpu_custom_call.1} parent=5 // pred_check
        _
      $region46: #{tpu_custom_call.1} parent=5 // pred_check_branch
        %244 = sbr.rel (%p241) target = $region48
      $region47: #{tpu_custom_call.1} parent=5 // pred_region
        %s245 = ssub.s32 %s16, 1
        %p246 = scmp.lt.s32.totalorder %s21, 1
        %s247 = scalar_select %p246, %s21, 1
        %s248 = smul.addr %s247, 2
        %s249 = smul.addr %s248, 8
        %s250 = scalar_lea.vmem %s0, %s249
        %p251 = pneg %p42
        %p252 = pneg %p39
        %p253 = pneg %p63
        %p254 = pneg %p60
        %p255 = pneg %p84
        %p256 = pneg %p81
        %p257 = pneg %p105
        %p258 = pneg %p102
        %p259 = pneg %p126
        %p260 = pneg %p123
        %p261 = pneg %p147
        %p262 = pneg %p144
        %p263 = pneg %p168
        %p264 = pneg %p165
        %p265 = pneg %p194
        %p266 = pneg %p191
        %s267 = sand.u32 %s181, 1
        %s268 = scalar_lea.sflag [#allocation3], %s267
        %s269 = sand.u32 %s181, 1
        %s270 = smul.addr %s269, 16
        %s271 = scalar_lea.vmem [#allocation2], %s270
        %p272 = scmp.lt.s32.totalorder %s21, 1
        %s273 = scalar_select %p272, %s21, 1
        %s274 = smul.addr %s273, 2
        %s275 = smul.addr %s274, 8
        %s276 = scalar_lea.vmem %s0, %s275
        %v278 = vld [vmem:[%s276] sm:$0xff]
        %v279 = vld [vmem:[%s276 + $0x8] sm:$0xff]
        %v280 = vpack.c.bf16 %v279, %v278
        %v281 = vld [vmem:[%s1] sm:$0xff]
        %v282 = vld [vmem:[%s1 + $0x8] sm:$0xf]
        %v283 = vld [vmem:[%s1 + $0xc] sm:$0xff]
        %v284 = vld [vmem:[%s1 + $0x14] sm:$0xf]
        %v285 = vld [vmem:[%s1 + $0x18] sm:$0xff]
        %v286 = vld [vmem:[%s1 + $0x20] sm:$0xf]
        %v287 = vld [vmem:[%s1 + $0x24] sm:$0xff]
        %v288 = vld [vmem:[%s1 + $0x2c] sm:$0xf]
        %v289 = vld [vmem:[%s1 + $0x30] sm:$0xff]
        %v290 = vld [vmem:[%s1 + $0x38] sm:$0xf]
        %v291 = vld [vmem:[%s1 + $0x3c] sm:$0xff]
        %v292 = vld [vmem:[%s1 + $0x44] sm:$0xf]
        %v293 = vld [vmem:[%s1 + $0x48] sm:$0xff]
        %v294 = vld [vmem:[%s1 + $0x50] sm:$0xf]
        %v295 = vld [vmem:[%s1 + $0x54] sm:$0xff]
        %v296 = vld [vmem:[%s1 + $0x5c] sm:$0xf]
        %v297 = vld [vmem:[%s2] sm:$0x7]
        %v299 = vlaneseq
        %v300 = vshrl.u32 %v299, 7
        %v301 = vsub.s32 0, %v300
        %v302 = vrot.slane %v297, %v301
        %v303 = vlaneseq
        %v304 = vshrl.u32 %v303, 7
        %v305 = vsub.s32 1, %v304
        %v306 = vrot.slane %v297, %v305
        %v307 = vlaneseq
        %v308 = vshrl.u32 %v307, 7
        %v309 = vsub.s32 2, %v308
        %v310 = vrot.slane %v297, %v309
        %v330 = vunpack.c.l.b16 %v281
        %v331 = vunpack.c.h.b16 %v281
        %v332 = vunpack.c.l.b16 %v282
        %v333 = vunpack.c.l.b16 %v283
        %v334 = vunpack.c.h.b16 %v283
        %v335 = vunpack.c.l.b16 %v284
        %v336 = vunpack.c.l.b16 %v285
        %v337 = vunpack.c.h.b16 %v285
        %v338 = vunpack.c.l.b16 %v286
        %v339 = vunpack.c.l.b16 %v287
        %v340 = vunpack.c.h.b16 %v287
        %v341 = vunpack.c.l.b16 %v288
        %v342 = vunpack.c.l.b16 %v289
        %v343 = vunpack.c.h.b16 %v289
        %v344 = vunpack.c.l.b16 %v290
        %v345 = vunpack.c.l.b16 %v291
        %v346 = vunpack.c.h.b16 %v291
        %v347 = vunpack.c.l.b16 %v292
        %v348 = vunpack.c.l.b16 %v293
        %v349 = vunpack.c.h.b16 %v293
        %v350 = vunpack.c.l.b16 %v294
        %v351 = vunpack.c.l.b16 %v295
        %v352 = vunpack.c.h.b16 %v295
        %v353 = vunpack.c.l.b16 %v296
        %v354 = vpack.c.b16 %v333, %v330
        %v355 = vpack.c.b16 %v334, %v331
        %v356 = vpack.c.b16 %v335, %v332
        %v357 = vpack.c.b16 %v339, %v336
        %v358 = vpack.c.b16 %v340, %v337
        %v359 = vpack.c.b16 %v341, %v338
        %v360 = vpack.c.b16 %v345, %v342
        %v361 = vpack.c.b16 %v346, %v343
        %v362 = vpack.c.b16 %v347, %v344
        %v363 = vpack.c.b16 %v351, %v348
        %v364 = vpack.c.b16 %v352, %v349
        %v365 = vpack.c.b16 %v353, %v350
        %vm378 = vcmask 523264
        %v380 = vsel %vm378, %v280, 0
        %382 = vmatprep.subr.bf16.mxu0 %v355
        %383 = vmatpush1.bf16.msra.mxu0 %v354
        %384 = vmatprep.subr.bf16.mxu0 %v358
        %385 = vmatpush1.bf16.msra.mxu0 %v357
        %386 = vmatprep.subr.bf16.mxu0 %v361
        %387 = vmatpush1.bf16.msra.mxu0 %v360
        %388 = vmatprep.subr.bf16.mxu0 %v364
        %389 = vmatpush1.bf16.msra.mxu0 %v363
        %390 = vmatprep.subr.bf16.mxu0 0
        %391 = vmatpush1.bf16.msra.mxu0 0
        %392 = vmatprep.subr.bf16.mxu0 0
        %393 = vmatpush1.bf16.msra.mxu0 0
        %394 = vmatprep.subr.bf16.mxu0 0
        %395 = vmatpush1.bf16.msra.mxu0 0
        %396 = vmatprep.subr.bf16.mxu0 0
        %397 = vmatpush1.bf16.msra.mxu0 0
        %398 = vmatprep.subr.bf16.mxu0 0
        %399 = vmatpush1.bf16.msra.mxu0 0
        %400 = vmatprep.subr.bf16.mxu0 0
        %401 = vmatpush1.bf16.msra.mxu0 0
        %402 = vmatprep.subr.bf16.mxu0 0
        %403 = vmatpush1.bf16.msra.mxu0 0
        %404 = vmatprep.subr.bf16.mxu0 0
        %405 = vmatpush1.bf16.msra.mxu0 0
        %406 = vmatprep.subr.bf16.mxu0 0
        %407 = vmatpush1.bf16.msra.mxu0 0
        %408 = vmatprep.subr.bf16.mxu0 0
        %409 = vmatpush1.bf16.msra.mxu0 0
        %410 = vmatprep.subr.bf16.mxu0 0
        %411 = vmatpush1.bf16.msra.mxu0 0
        %412 = vmatprep.subr.bf16.mxu0 0
        %413 = vmatpush1.bf16.msra.mxu0 0
        %414 = vmatprep.mubr.bf16.mxu0 0
        %415 = vmatmul.mubr.bf16.gmra.mrb[0].mxu0 %v380
        %v416 = vpop.f32.mrb[0].mxu0
        %v417 = vadd.f32 %v302, %v416
        %v418 = vpop.f32.mrb[0].mxu0
        %v419 = vadd.f32 %v306, %v418
        %v420 = vpop.f32.mrb[0].mxu0
        %v421 = vadd.f32 %v302, %v420
        %v422 = vpop.f32.mrb[0].mxu0
        %v423 = vadd.f32 %v306, %v422
        %424 = vdwg.mxu0
        %425 = vmatprep.subr.bf16.mxu0 0
        %426 = vmatpush1.bf16.msra.mxu0 %v356
        %427 = vmatprep.subr.bf16.mxu0 0
        %428 = vmatpush1.bf16.msra.mxu0 %v359
        %429 = vmatprep.subr.bf16.mxu0 0
        %430 = vmatpush1.bf16.msra.mxu0 %v362
        %431 = vmatprep.subr.bf16.mxu0 0
        %432 = vmatpush1.bf16.msra.mxu0 %v365
        %433 = vmatprep.subr.bf16.mxu0 0
        %434 = vmatpush1.bf16.msra.mxu0 0
        %435 = vmatprep.subr.bf16.mxu0 0
        %436 = vmatpush1.bf16.msra.mxu0 0
        %437 = vmatprep.subr.bf16.mxu0 0
        %438 = vmatpush1.bf16.msra.mxu0 0
        %439 = vmatprep.subr.bf16.mxu0 0
        %440 = vmatpush1.bf16.msra.mxu0 0
        %441 = vmatprep.subr.bf16.mxu0 0
        %442 = vmatpush1.bf16.msra.mxu0 0
        %443 = vmatprep.subr.bf16.mxu0 0
        %444 = vmatpush1.bf16.msra.mxu0 0
        %445 = vmatprep.subr.bf16.mxu0 0
        %446 = vmatpush1.bf16.msra.mxu0 0
        %447 = vmatprep.subr.bf16.mxu0 0
        %448 = vmatpush1.bf16.msra.mxu0 0
        %449 = vmatprep.subr.bf16.mxu0 0
        %450 = vmatpush1.bf16.msra.mxu0 0
        %451 = vmatprep.subr.bf16.mxu0 0
        %452 = vmatpush1.bf16.msra.mxu0 0
        %453 = vmatprep.subr.bf16.mxu0 0
        %454 = vmatpush1.bf16.msra.mxu0 0
        %455 = vmatprep.subr.bf16.mxu0 0
        %456 = vmatpush1.bf16.msra.mxu0 0
        %457 = vmatprep.mubr.bf16.mxu0 0
        %458 = vmatmul.mubr.bf16.gmra.mrb[0].mxu0 %v380
        %v459 = vpop.f32.mrb[0].mxu0
        %v460 = vadd.f32 %v310, %v459
        %v461 = vpop.f32.mrb[0].mxu0
        %v462 = vpop.f32.mrb[0].mxu0
        %v463 = vadd.f32 %v310, %v462
        %v464 = vpop.f32.mrb[0].mxu0
        %465 = vdwg.mxu0
        %v466 = vmax.f32 %v417, 0.0
        %v467 = vmax.f32 %v419, 0.0
        %v468 = vmax.f32 %v460, 0.0
        %v469 = vmax.f32 %v421, 0.0
        %v470 = vmax.f32 %v423, 0.0
        %v471 = vmax.f32 %v463, 0.0
        %v472 = vmin.f32 %v466, 6.0
        %v473 = vmin.f32 %v467, 6.0
        %v474 = vmin.f32 %v468, 6.0
        %v475 = vmin.f32 %v469, 6.0
        %v476 = vmin.f32 %v470, 6.0
        %v477 = vmin.f32 %v471, 6.0
        %vm484 = vcmask 1040384
        %v485 = vrot.slane %v472, 7
        %v486 = vrot.slane %v473, 7
        %v487 = vrot.slane %v474, 7
        %v488 = vrot.slane %v475, 7
        %v489 = vsel %vm484, %v485, %v488
        %v490 = vrot.slane %v476, 7
        %v491 = vsel %vm484, %v486, %v490
        %v492 = vrot.slane %v477, 7
        %v493 = vsel %vm484, %v487, %v492
        %v503 = vsel %vm484, 0.0, %v485
        %v504 = vsel %vm484, 0.0, %v486
        %v505 = vsel %vm484, 0.0, %v487
        %v506 = vsel %vm484, %v488, 0.0
        %v507 = vsel %vm484, %v490, 0.0
        %v508 = vsel %vm484, %v492, 0.0
        %v509 = vld [vmem:[%s3] sm:$0xff]
        %v510 = vld [vmem:[%s3 + $0x8] sm:$0xff]
        %v511 = vld [vmem:[%s3 + $0x10] sm:$0x1]
        %v512 = vld [vmem:[%s3 + $0x18] sm:$0x1]
        %v513 = vlaneseq
        %v514 = vshrl.u32 %v513, 7
        %v515 = vsub.s32 0, %v514
        %v516 = vrot.slane %v509, %v515
        %v517 = vlaneseq
        %v518 = vshrl.u32 %v517, 7
        %v519 = vsub.s32 0, %v518
        %v520 = vrot.slane %v510, %v519
        %v521 = vmul.f32 %v503, %v516
        %v522 = vmul.f32 %v504, %v520
        %v523 = vmul.f32 %v489, %v516
        %v524 = vmul.f32 %v491, %v520
        %v525 = vadd.f32 %v521, 0.0
        %v526 = vadd.f32 %v522, 0.0
        %v527 = vadd.f32 %v523, 0.0
        %v528 = vadd.f32 %v524, 0.0
        %v529 = vlaneseq
        %v530 = vshrl.u32 %v529, 7
        %v531 = vsub.s32 3, %v530
        %v532 = vrot.slane %v509, %v531
        %v533 = vlaneseq
        %v534 = vshrl.u32 %v533, 7
        %v535 = vsub.s32 3, %v534
        %v536 = vrot.slane %v510, %v535
        %v537 = vmul.f32 %v503, %v532
        %v538 = vmul.f32 %v504, %v536
        %v539 = vmul.f32 %v489, %v532
        %v540 = vmul.f32 %v491, %v536
        %v541 = vmul.f32 %v506, %v532
        %v542 = vmul.f32 %v507, %v536
        %vm549 = vcmask 1046528
        %v550 = vrot.slane %v537, 1
        %v551 = vrot.slane %v539, 1
        %v552 = vsel %vm549, %v550, %v551
        %v553 = vrot.slane %v538, 1
        %v554 = vrot.slane %v540, 1
        %v555 = vsel %vm549, %v553, %v554
        %v556 = vrot.slane %v541, 1
        %v557 = vsel %vm549, %v551, %v556
        %v558 = vrot.slane %v542, 1
        %v559 = vsel %vm549, %v554, %v558
        %v564 = vadd.f32 %v525, %v552
        %v565 = vadd.f32 %v526, %v555
        %v566 = vadd.f32 %v527, %v557
        %v567 = vadd.f32 %v528, %v559
        %v568 = vlaneseq
        %v569 = vshrl.u32 %v568, 7
        %v570 = vsub.s32 6, %v569
        %v571 = vrot.slane %v509, %v570
        %v572 = vlaneseq
        %v573 = vshrl.u32 %v572, 7
        %v574 = vsub.s32 6, %v573
        %v575 = vrot.slane %v510, %v574
        %v576 = vmul.f32 %v503, %v571
        %v577 = vmul.f32 %v504, %v575
        %v578 = vmul.f32 %v489, %v571
        %v579 = vmul.f32 %v491, %v575
        %v580 = vmul.f32 %v506, %v571
        %v581 = vmul.f32 %v507, %v575
        %vm588 = vcmask 1045504
        %v589 = vrot.slane %v576, 2
        %v590 = vrot.slane %v578, 2
        %v591 = vsel %vm588, %v589, %v590
        %v592 = vrot.slane %v577, 2
        %v593 = vrot.slane %v579, 2
        %v594 = vsel %vm588, %v592, %v593
        %v595 = vrot.slane %v580, 2
        %v596 = vsel %vm588, %v590, %v595
        %v597 = vrot.slane %v581, 2
        %v598 = vsel %vm588, %v593, %v597
        %v603 = vadd.f32 %v564, %v591
        %v604 = vadd.f32 %v565, %v594
        %v605 = vadd.f32 %v566, %v596
        %v606 = vadd.f32 %v567, %v598
        %v607 = vlaneseq
        %v608 = vshrl.u32 %v607, 7
        %v609 = vsub.s32 1, %v608
        %v610 = vrot.slane %v509, %v609
        %v611 = vlaneseq
        %v612 = vshrl.u32 %v611, 7
        %v613 = vsub.s32 1, %v612
        %v614 = vrot.slane %v510, %v613
        %617 = vrot.lane.b32.xlu0 %v610, 16
        %v618 = vpop.permute.xlu0 %617
        %619 = vrot.lane.b32.xlu0 %v614, 16
        %v620 = vpop.permute.xlu0 %619
        %vm621 = vcmask 130048
        %v622 = vsel %vm621, %v618, %v620
        %v626 = vmul.f32 %v503, %v618
        %v627 = vmul.f32 %v504, %v622
        %v628 = vmul.f32 %v505, %v620
        %v629 = vmul.f32 %v489, %v618
        %v630 = vmul.f32 %v491, %v622
        %v631 = vmul.f32 %v493, %v620
        %638 = vrot.lane.b32.xlu0 %v626, 112
        %v639 = vpop.permute.xlu0 %638
        %640 = vrot.lane.b32.xlu0 %v627, 112
        %v641 = vpop.permute.xlu0 %640
        %642 = vrot.lane.b32.xlu0 %v628, 112
        %v643 = vpop.permute.xlu0 %642
        %644 = vrot.lane.b32.xlu0 %v629, 112
        %v645 = vpop.permute.xlu0 %644
        %646 = vrot.lane.b32.xlu0 %v630, 112
        %v647 = vpop.permute.xlu0 %646
        %648 = vrot.lane.b32.xlu0 %v631, 112
        %v649 = vpop.permute.xlu0 %648
        %vm650 = vcmask 916480
        %v651 = vsel %vm650, %v639, %v641
        %v652 = vsel %vm650, %v641, %v643
        %v653 = vsel %vm650, %v645, %v647
        %v654 = vsel %vm650, %v647, %v649
        %v659 = vadd.f32 %v603, %v651
        %v660 = vadd.f32 %v604, %v652
        %v661 = vadd.f32 %v605, %v653
        %v662 = vadd.f32 %v606, %v654
        %v663 = vlaneseq
        %v664 = vshrl.u32 %v663, 7
        %v665 = vsub.s32 4, %v664
        %v666 = vrot.slane %v509, %v665
        %v667 = vlaneseq
        %v668 = vshrl.u32 %v667, 7
        %v669 = vsub.s32 4, %v668
        %v670 = vrot.slane %v510, %v669
        %673 = vrot.lane.b32.xlu0 %v666, 16
        %v674 = vpop.permute.xlu0 %673
        %675 = vrot.lane.b32.xlu0 %v670, 16
        %v676 = vpop.permute.xlu0 %675
        %v677 = vsel %vm621, %v674, %v676
        %v681 = vmul.f32 %v503, %v674
        %v682 = vmul.f32 %v504, %v677
        %v683 = vmul.f32 %v505, %v676
        %v684 = vmul.f32 %v489, %v674
        %v685 = vmul.f32 %v491, %v677
        %v686 = vmul.f32 %v493, %v676
        %v687 = vmul.f32 %v506, %v674
        %v688 = vmul.f32 %v507, %v677
        %v689 = vmul.f32 %v508, %v676
        %v699 = vrot.slane %v681, 1
        %v700 = vrot.slane %v684, 1
        %v701 = vsel %vm549, %v699, %v700
        %v702 = vrot.slane %v682, 1
        %v703 = vrot.slane %v685, 1
        %v704 = vsel %vm549, %v702, %v703
        %v705 = vrot.slane %v683, 1
        %v706 = vrot.slane %v686, 1
        %v707 = vsel %vm549, %v705, %v706
        %v708 = vrot.slane %v687, 1
        %v709 = vsel %vm549, %v700, %v708
        %v710 = vrot.slane %v688, 1
        %v711 = vsel %vm549, %v703, %v710
        %v712 = vrot.slane %v689, 1
        %v713 = vsel %vm549, %v706, %v712
        %714 = vrot.lane.b32.xlu0 %v701, 112
        %v715 = vpop.permute.xlu0 %714
        %716 = vrot.lane.b32.xlu0 %v704, 112
        %v717 = vpop.permute.xlu0 %716
        %718 = vrot.lane.b32.xlu0 %v707, 112
        %v719 = vpop.permute.xlu0 %718
        %720 = vrot.lane.b32.xlu0 %v709, 112
        %v721 = vpop.permute.xlu0 %720
        %722 = vrot.lane.b32.xlu0 %v711, 112
        %v723 = vpop.permute.xlu0 %722
        %724 = vrot.lane.b32.xlu0 %v713, 112
        %v725 = vpop.permute.xlu0 %724
        %v726 = vsel %vm650, %v715, %v717
        %v727 = vsel %vm650, %v717, %v719
        %v728 = vsel %vm650, %v721, %v723
        %v729 = vsel %vm650, %v723, %v725
        %v734 = vadd.f32 %v659, %v726
        %v735 = vadd.f32 %v660, %v727
        %v736 = vadd.f32 %v661, %v728
        %v737 = vadd.f32 %v662, %v729
        %v738 = vlaneseq
        %v739 = vshrl.u32 %v738, 7
        %v740 = vsub.s32 7, %v739
        %v741 = vrot.slane %v509, %v740
        %v742 = vlaneseq
        %v743 = vshrl.u32 %v742, 7
        %v744 = vsub.s32 7, %v743
        %v745 = vrot.slane %v510, %v744
        %748 = vrot.lane.b32.xlu0 %v741, 16
        %v749 = vpop.permute.xlu0 %748
        %750 = vrot.lane.b32.xlu0 %v745, 16
        %v751 = vpop.permute.xlu0 %750
        %v752 = vsel %vm621, %v749, %v751
        %v756 = vmul.f32 %v503, %v749
        %v757 = vmul.f32 %v504, %v752
        %v758 = vmul.f32 %v505, %v751
        %v759 = vmul.f32 %v489, %v749
        %v760 = vmul.f32 %v491, %v752
        %v761 = vmul.f32 %v493, %v751
        %v762 = vmul.f32 %v506, %v749
        %v763 = vmul.f32 %v507, %v752
        %v764 = vmul.f32 %v508, %v751
        %v774 = vrot.slane %v756, 2
        %v775 = vrot.slane %v759, 2
        %v776 = vsel %vm588, %v774, %v775
        %v777 = vrot.slane %v757, 2
        %v778 = vrot.slane %v760, 2
        %v779 = vsel %vm588, %v777, %v778
        %v780 = vrot.slane %v758, 2
        %v781 = vrot.slane %v761, 2
        %v782 = vsel %vm588, %v780, %v781
        %v783 = vrot.slane %v762, 2
        %v784 = vsel %vm588, %v775, %v783
        %v785 = vrot.slane %v763, 2
        %v786 = vsel %vm588, %v778, %v785
        %v787 = vrot.slane %v764, 2
        %v788 = vsel %vm588, %v781, %v787
        %789 = vrot.lane.b32.xlu0 %v776, 112
        %v790 = vpop.permute.xlu0 %789
        %791 = vrot.lane.b32.xlu0 %v779, 112
        %v792 = vpop.permute.xlu0 %791
        %793 = vrot.lane.b32.xlu0 %v782, 112
        %v794 = vpop.permute.xlu0 %793
        %795 = vrot.lane.b32.xlu0 %v784, 112
        %v796 = vpop.permute.xlu0 %795
        %797 = vrot.lane.b32.xlu0 %v786, 112
        %v798 = vpop.permute.xlu0 %797
        %799 = vrot.lane.b32.xlu0 %v788, 112
        %v800 = vpop.permute.xlu0 %799
        %v801 = vsel %vm650, %v790, %v792
        %v802 = vsel %vm650, %v792, %v794
        %v803 = vsel %vm650, %v796, %v798
        %v804 = vsel %vm650, %v798, %v800
        %v809 = vadd.f32 %v734, %v801
        %v810 = vadd.f32 %v735, %v802
        %v811 = vadd.f32 %v736, %v803
        %v812 = vadd.f32 %v737, %v804
        %v813 = vlaneseq
        %v814 = vshrl.u32 %v813, 7
        %v815 = vsub.s32 2, %v814
        %v816 = vrot.slane %v509, %v815
        %v817 = vlaneseq
        %v818 = vshrl.u32 %v817, 7
        %v819 = vsub.s32 2, %v818
        %v820 = vrot.slane %v510, %v819
        %823 = vrot.lane.b32.xlu0 %v816, 32
        %v824 = vpop.permute.xlu0 %823
        %825 = vrot.lane.b32.xlu0 %v820, 32
        %v826 = vpop.permute.xlu0 %825
        %vm827 = vcmask 261120
        %v828 = vsel %vm827, %v824, %v826
        %v832 = vmul.f32 %v503, %v824
        %v833 = vmul.f32 %v504, %v828
        %v834 = vmul.f32 %v505, %v826
        %v835 = vmul.f32 %v489, %v824
        %v836 = vmul.f32 %v491, %v828
        %v837 = vmul.f32 %v493, %v826
        %844 = vrot.lane.b32.xlu0 %v832, 96
        %v845 = vpop.permute.xlu0 %844
        %846 = vrot.lane.b32.xlu0 %v833, 96
        %v847 = vpop.permute.xlu0 %846
        %848 = vrot.lane.b32.xlu0 %v834, 96
        %v849 = vpop.permute.xlu0 %848
        %850 = vrot.lane.b32.xlu0 %v835, 96
        %v851 = vpop.permute.xlu0 %850
        %852 = vrot.lane.b32.xlu0 %v836, 96
        %v853 = vpop.permute.xlu0 %852
        %854 = vrot.lane.b32.xlu0 %v837, 96
        %v855 = vpop.permute.xlu0 %854
        %vm856 = vcmask 785408
        %v857 = vsel %vm856, %v845, %v847
        %v858 = vsel %vm856, %v847, %v849
        %v859 = vsel %vm856, %v851, %v853
        %v860 = vsel %vm856, %v853, %v855
        %v865 = vadd.f32 %v809, %v857
        %v866 = vadd.f32 %v810, %v858
        %v867 = vadd.f32 %v811, %v859
        %v868 = vadd.f32 %v812, %v860
        %v869 = vlaneseq
        %v870 = vshrl.u32 %v869, 7
        %v871 = vsub.s32 5, %v870
        %v872 = vrot.slane %v509, %v871
        %v873 = vlaneseq
        %v874 = vshrl.u32 %v873, 7
        %v875 = vsub.s32 5, %v874
        %v876 = vrot.slane %v510, %v875
        %879 = vrot.lane.b32.xlu0 %v872, 32
        %v880 = vpop.permute.xlu0 %879
        %881 = vrot.lane.b32.xlu0 %v876, 32
        %v882 = vpop.permute.xlu0 %881
        %v883 = vsel %vm827, %v880, %v882
        %v887 = vmul.f32 %v503, %v880
        %v888 = vmul.f32 %v504, %v883
        %v889 = vmul.f32 %v505, %v882
        %v890 = vmul.f32 %v489, %v880
        %v891 = vmul.f32 %v491, %v883
        %v892 = vmul.f32 %v493, %v882
        %v893 = vmul.f32 %v506, %v880
        %v894 = vmul.f32 %v507, %v883
        %v895 = vmul.f32 %v508, %v882
        %v905 = vrot.slane %v887, 1
        %v906 = vrot.slane %v890, 1
        %v907 = vsel %vm549, %v905, %v906
        %v908 = vrot.slane %v888, 1
        %v909 = vrot.slane %v891, 1
        %v910 = vsel %vm549, %v908, %v909
        %v911 = vrot.slane %v889, 1
        %v912 = vrot.slane %v892, 1
        %v913 = vsel %vm549, %v911, %v912
        %v914 = vrot.slane %v893, 1
        %v915 = vsel %vm549, %v906, %v914
        %v916 = vrot.slane %v894, 1
        %v917 = vsel %vm549, %v909, %v916
        %v918 = vrot.slane %v895, 1
        %v919 = vsel %vm549, %v912, %v918
        %920 = vrot.lane.b32.xlu0 %v907, 96
        %v921 = vpop.permute.xlu0 %920
        %922 = vrot.lane.b32.xlu0 %v910, 96
        %v923 = vpop.permute.xlu0 %922
        %924 = vrot.lane.b32.xlu0 %v913, 96
        %v925 = vpop.permute.xlu0 %924
        %926 = vrot.lane.b32.xlu0 %v915, 96
        %v927 = vpop.permute.xlu0 %926
        %928 = vrot.lane.b32.xlu0 %v917, 96
        %v929 = vpop.permute.xlu0 %928
        %930 = vrot.lane.b32.xlu0 %v919, 96
        %v931 = vpop.permute.xlu0 %930
        %v932 = vsel %vm856, %v921, %v923
        %v933 = vsel %vm856, %v923, %v925
        %v934 = vsel %vm856, %v927, %v929
        %v935 = vsel %vm856, %v929, %v931
        %v940 = vadd.f32 %v865, %v932
        %v941 = vadd.f32 %v866, %v933
        %v942 = vadd.f32 %v867, %v934
        %v943 = vadd.f32 %v868, %v935
        %v944 = vlaneseq
        %v945 = vshrl.u32 %v944, 7
        %v946 = vsub.s32 0, %v945
        %v947 = vrot.slane %v511, %v946
        %v948 = vlaneseq
        %v949 = vshrl.u32 %v948, 7
        %v950 = vsub.s32 0, %v949
        %v951 = vrot.slane %v512, %v950
        %954 = vrot.lane.b32.xlu0 %v947, 32
        %v955 = vpop.permute.xlu0 %954
        %956 = vrot.lane.b32.xlu0 %v951, 32
        %v957 = vpop.permute.xlu0 %956
        %v958 = vsel %vm827, %v955, %v957
        %v962 = vmul.f32 %v503, %v955
        %v963 = vmul.f32 %v504, %v958
        %v964 = vmul.f32 %v505, %v957
        %v965 = vmul.f32 %v489, %v955
        %v966 = vmul.f32 %v491, %v958
        %v967 = vmul.f32 %v493, %v957
        %v968 = vmul.f32 %v506, %v955
        %v969 = vmul.f32 %v507, %v958
        %v970 = vmul.f32 %v508, %v957
        %v980 = vrot.slane %v962, 2
        %v981 = vrot.slane %v965, 2
        %v982 = vsel %vm588, %v980, %v981
        %v983 = vrot.slane %v963, 2
        %v984 = vrot.slane %v966, 2
        %v985 = vsel %vm588, %v983, %v984
        %v986 = vrot.slane %v964, 2
        %v987 = vrot.slane %v967, 2
        %v988 = vsel %vm588, %v986, %v987
        %v989 = vrot.slane %v968, 2
        %v990 = vsel %vm588, %v981, %v989
        %v991 = vrot.slane %v969, 2
        %v992 = vsel %vm588, %v984, %v991
        %v993 = vrot.slane %v970, 2
        %v994 = vsel %vm588, %v987, %v993
        %995 = vrot.lane.b32.xlu0 %v982, 96
        %v996 = vpop.permute.xlu0 %995
        %997 = vrot.lane.b32.xlu0 %v985, 96
        %v998 = vpop.permute.xlu0 %997
        %999 = vrot.lane.b32.xlu0 %v988, 96
        %v1000 = vpop.permute.xlu0 %999
        %1001 = vrot.lane.b32.xlu0 %v990, 96
        %v1002 = vpop.permute.xlu0 %1001
        %1003 = vrot.lane.b32.xlu0 %v992, 96
        %v1004 = vpop.permute.xlu0 %1003
        %1005 = vrot.lane.b32.xlu0 %v994, 96
        %v1006 = vpop.permute.xlu0 %1005
        %v1007 = vsel %vm856, %v996, %v998
        %v1008 = vsel %vm856, %v998, %v1000
        %v1009 = vsel %vm856, %v1002, %v1004
        %v1010 = vsel %vm856, %v1004, %v1006
        %v1015 = vadd.f32 %v940, %v1007
        %v1016 = vadd.f32 %v941, %v1008
        %v1017 = vadd.f32 %v942, %v1009
        %v1018 = vadd.f32 %v943, %v1010
        %v1019 = vld [vmem:[%s4] sm:$0x3]
        %v1021 = vlaneseq
        %v1022 = vshrl.u32 %v1021, 7
        %v1023 = vsub.s32 0, %v1022
        %v1024 = vrot.slane %v1019, %v1023
        %v1025 = vlaneseq
        %v1026 = vshrl.u32 %v1025, 7
        %v1027 = vsub.s32 1, %v1026
        %v1028 = vrot.slane %v1019, %v1027
        %v1031 = vadd.f32 %v1015, %v1024
        %v1032 = vadd.f32 %v1016, %v1028
        %v1033 = vadd.f32 %v1017, %v1024
        %v1034 = vadd.f32 %v1018, %v1028
        %v1035 = vmax.f32 %v1031, 0.0
        %v1036 = vmax.f32 %v1032, 0.0
        %v1037 = vmax.f32 %v1033, 0.0
        %v1038 = vmax.f32 %v1034, 0.0
        %v1039 = vmin.f32 %v1035, 6.0
        %v1040 = vmin.f32 %v1036, 6.0
        %v1041 = vmin.f32 %v1037, 6.0
        %v1042 = vmin.f32 %v1038, 6.0
        %v1043 = vpack.c.bf16 %v1041, %v1039
        %v1044 = vpack.c.bf16 %v1042, %v1040
        %v1045 = vld [vmem:[%s5] sm:$0xf]
        %v1046 = vld [vmem:[%s5 + $0x4] sm:$0xf]
        %v1047 = vld [vmem:[%s5 + $0x8] sm:$0xf]
        %v1048 = vld [vmem:[%s5 + $0xc] sm:$0xf]
        %v1049 = vld [vmem:[%s5 + $0x10] sm:$0xf]
        %v1050 = vld [vmem:[%s5 + $0x14] sm:$0xf]
        %v1051 = vld [vmem:[%s5 + $0x18] sm:$0xf]
        %v1052 = vld [vmem:[%s5 + $0x1c] sm:$0xf]
        %v1053 = vld [vmem:[%s5 + $0x20] sm:$0xf]
        %v1054 = vld [vmem:[%s5 + $0x24] sm:$0xf]
        %v1055 = vld [vmem:[%s5 + $0x28] sm:$0xf]
        %v1056 = vld [vmem:[%s5 + $0x2c] sm:$0xf]
        %v1057 = vld [vmem:[%s5 + $0x30] sm:$0xf]
        %v1058 = vld [vmem:[%s5 + $0x34] sm:$0xf]
        %v1059 = vld [vmem:[%s5 + $0x38] sm:$0xf]
        %v1060 = vld [vmem:[%s5 + $0x3c] sm:$0xf]
        %v1061 = vld [vmem:[%s5 + $0x40] sm:$0xf]
        %v1062 = vld [vmem:[%s5 + $0x44] sm:$0xf]
        %v1063 = vld [vmem:[%s5 + $0x48] sm:$0xf]
        %v1064 = vld [vmem:[%s5 + $0x4c] sm:$0xf]
        %v1065 = vld [vmem:[%s5 + $0x50] sm:$0xf]
        %v1066 = vld [vmem:[%s5 + $0x54] sm:$0xf]
        %v1067 = vld [vmem:[%s5 + $0x58] sm:$0xf]
        %v1068 = vld [vmem:[%s5 + $0x5c] sm:$0xf]
        %v1069 = vld [vmem:[%s5 + $0x60] sm:$0xf]
        %v1070 = vld [vmem:[%s5 + $0x64] sm:$0xf]
        %v1071 = vld [vmem:[%s5 + $0x68] sm:$0xf]
        %v1072 = vld [vmem:[%s5 + $0x6c] sm:$0xf]
        %v1073 = vld [vmem:[%s5 + $0x70] sm:$0xf]
        %v1074 = vld [vmem:[%s5 + $0x74] sm:$0xf]
        %v1075 = vld [vmem:[%s5 + $0x78] sm:$0xf]
        %v1076 = vld [vmem:[%s5 + $0x7c] sm:$0xf]
        %v1077 = vld [vmem:[%s6] sm:$0x1]
        %v1079 = vlaneseq
        %v1080 = vshrl.u32 %v1079, 7
        %v1081 = vsub.s32 0, %v1080
        %v1082 = vrot.slane %v1077, %v1081
        %v1116 = vunpack.c.l.b16 %v1045
        %v1117 = vunpack.c.l.b16 %v1046
        %v1118 = vunpack.c.l.b16 %v1047
        %v1119 = vunpack.c.l.b16 %v1048
        %v1120 = vunpack.c.l.b16 %v1049
        %v1121 = vunpack.c.l.b16 %v1050
        %v1122 = vunpack.c.l.b16 %v1051
        %v1123 = vunpack.c.l.b16 %v1052
        %v1124 = vunpack.c.l.b16 %v1053
        %v1125 = vunpack.c.l.b16 %v1054
        %v1126 = vunpack.c.l.b16 %v1055
        %v1127 = vunpack.c.l.b16 %v1056
        %v1128 = vunpack.c.l.b16 %v1057
        %v1129 = vunpack.c.l.b16 %v1058
        %v1130 = vunpack.c.l.b16 %v1059
        %v1131 = vunpack.c.l.b16 %v1060
        %v1132 = vunpack.c.l.b16 %v1061
        %v1133 = vunpack.c.l.b16 %v1062
        %v1134 = vunpack.c.l.b16 %v1063
        %v1135 = vunpack.c.l.b16 %v1064
        %v1136 = vunpack.c.l.b16 %v1065
        %v1137 = vunpack.c.l.b16 %v1066
        %v1138 = vunpack.c.l.b16 %v1067
        %v1139 = vunpack.c.l.b16 %v1068
        %v1140 = vunpack.c.l.b16 %v1069
        %v1141 = vunpack.c.l.b16 %v1070
        %v1142 = vunpack.c.l.b16 %v1071
        %v1143 = vunpack.c.l.b16 %v1072
        %v1144 = vunpack.c.l.b16 %v1073
        %v1145 = vunpack.c.l.b16 %v1074
        %v1146 = vunpack.c.l.b16 %v1075
        %v1147 = vunpack.c.l.b16 %v1076
        %v1148 = vpack.c.b16 %v1117, %v1116
        %v1149 = vpack.c.b16 %v1119, %v1118
        %v1150 = vpack.c.b16 %v1121, %v1120
        %v1151 = vpack.c.b16 %v1123, %v1122
        %v1152 = vpack.c.b16 %v1125, %v1124
        %v1153 = vpack.c.b16 %v1127, %v1126
        %v1154 = vpack.c.b16 %v1129, %v1128
        %v1155 = vpack.c.b16 %v1131, %v1130
        %v1156 = vpack.c.b16 %v1133, %v1132
        %v1157 = vpack.c.b16 %v1135, %v1134
        %v1158 = vpack.c.b16 %v1137, %v1136
        %v1159 = vpack.c.b16 %v1139, %v1138
        %v1160 = vpack.c.b16 %v1141, %v1140
        %v1161 = vpack.c.b16 %v1143, %v1142
        %v1162 = vpack.c.b16 %v1145, %v1144
        %v1163 = vpack.c.b16 %v1147, %v1146
        %1180 = vmatprep.subr.bf16.mxu0 0
        %1181 = vmatpush1.bf16.msra.mxu0 %v1148
        %1182 = vmatprep.subr.bf16.mxu0 0
        %1183 = vmatpush1.bf16.msra.mxu0 %v1149
        %1184 = vmatprep.subr.bf16.mxu0 0
        %1185 = vmatpush1.bf16.msra.mxu0 %v1150
        %1186 = vmatprep.subr.bf16.mxu0 0
        %1187 = vmatpush1.bf16.msra.mxu0 %v1151
        %1188 = vmatprep.subr.bf16.mxu0 0
        %1189 = vmatpush1.bf16.msra.mxu0 %v1152
        %1190 = vmatprep.subr.bf16.mxu0 0
        %1191 = vmatpush1.bf16.msra.mxu0 %v1153
        %1192 = vmatprep.subr.bf16.mxu0 0
        %1193 = vmatpush1.bf16.msra.mxu0 %v1154
        %1194 = vmatprep.subr.bf16.mxu0 0
        %1195 = vmatpush1.bf16.msra.mxu0 %v1155
        %1196 = vmatprep.subr.bf16.mxu0 0
        %1197 = vmatpush1.bf16.msra.mxu0 %v1156
        %1198 = vmatprep.subr.bf16.mxu0 0
        %1199 = vmatpush1.bf16.msra.mxu0 %v1157
        %1200 = vmatprep.subr.bf16.mxu0 0
        %1201 = vmatpush1.bf16.msra.mxu0 %v1158
        %1202 = vmatprep.subr.bf16.mxu0 0
        %1203 = vmatpush1.bf16.msra.mxu0 %v1159
        %1204 = vmatprep.subr.bf16.mxu0 0
        %1205 = vmatpush1.bf16.msra.mxu0 %v1160
        %1206 = vmatprep.subr.bf16.mxu0 0
        %1207 = vmatpush1.bf16.msra.mxu0 %v1161
        %1208 = vmatprep.subr.bf16.mxu0 0
        %1209 = vmatpush1.bf16.msra.mxu0 %v1162
        %1210 = vmatprep.subr.bf16.mxu0 0
        %1211 = vmatpush1.bf16.msra.mxu0 %v1163
        %1212 = vmatprep.mubr.bf16.mxu0 %v1044
        %1213 = vmatmul.mubr.bf16.gmra.mrb[0].mxu0 %v1043
        %v1214 = vpop.f32.mrb[0].mxu0
        %v1215 = vadd.f32 %v1082, %v1214
        %v1216 = vpop.f32.mrb[0].mxu0
        %v1217 = vpop.f32.mrb[0].mxu0
        %v1218 = vadd.f32 %v1082, %v1217
        %v1219 = vpop.f32.mrb[0].mxu0
        %1220 = vdwg.mxu0
        %v1221 = vadd.f32 %v1215, %v278
        %v1222 = vadd.f32 %v1218, %v279
        %1223 = vst.msk [vmem:[%s271] sm:$0xff] %vm378, %v1221
        %1224 = vst.msk [vmem:[%s271 + $0x8] sm:$0xff] %vm378, %v1222
        %s1225 = sand.u32 %s181, 1
        %s1226 = scalar_lea.sflag [#allocation3], %s1225
        %s1227 = sand.u32 %s181, 1
        %s1228 = smul.addr %s1227, 16
        %s1229 = scalar_lea.vmem [#allocation2], %s1228
        // Predicated region
        $region49: #{tpu_custom_call.1} parent=47 // pred_check
          %p1230 = pneg %p191
        $region50: #{tpu_custom_call.1} parent=47 // pred_check_branch
          %1232 = sbr.rel (%p1230) target = $region52
        $region51: #{tpu_custom_call.1} parent=47 // pred_region
          %s1234 = ssub.s32 256, 256
          %1235 = vsyncadd %s1226, %s1234
          %s1236 = smul.addr %s21, 2
          %s1237 = smul.addr %s1236, 128
          %s1238 = scalar_lea.hbm %s7, %s1237
          %s1239 = sshll.u32 %s1229, 4
          %s1240 = int_to_ptr.vmem [resolvable:$true] %s1239
          %1245 = dma.vmem_to_hbm [thread:$0]  %s1240, 256, %s1238, %s1226, 128, 128, 8
        $region52: #{tpu_custom_call.1} parent=47 // pred_fallthru
          _
      $region48: #{tpu_custom_call.1} parent=5 // pred_fallthru
        _
      %p1246 = scmp.le.s32.totalorder 2, %s16
      // Predicated region
      $region53: #{tpu_custom_call.1} parent=5 // pred_check
        %p1247 = pneg %p1246
      $region54: #{tpu_custom_call.1} parent=5 // pred_check_branch
        %1249 = sbr.rel (%p1247) target = $region56
      $region55: #{tpu_custom_call.1} parent=5 // pred_region
        %s1250 = ssub.s32 %s16, 2
        // Predicated region
        $region57: #{tpu_custom_call.1} parent=55 // pred_check
          %p1251 = pneg %p197
        $region58: #{tpu_custom_call.1} parent=55 // pred_check_branch
          %1253 = sbr.rel (%p1251) target = $region60
        $region59: #{tpu_custom_call.1} parent=55 // pred_region
          %s1254 = sand.u32 %s182, 1
          %s1255 = scalar_lea.sflag [#allocation3], %s1254
          %s1256 = sand.u32 %s182, 1
          %s1257 = smul.addr %s1256, 16
          %s1258 = scalar_lea.vmem [#allocation2], %s1257
          %1259 = dma.done %s1255, 256
        $region60: #{tpu_custom_call.1} parent=55 // pred_fallthru
          _
      $region56: #{tpu_custom_call.1} parent=5 // pred_fallthru
        _
    $region6: #{tpu_custom_call.1} parent=1 // loop_footer
      %s20 = sadd.s32 1, %s16
    $region7: #{tpu_custom_call.1} parent=1 // loop_footer_branch
      %15 = sbr.rel target = $region3
    $region8: #{tpu_custom_call.1} parent=1 // loop_exit
      _
    %1260 = vsyncpa [#allocation3], 1
    %s1261 = scalar_lea.sflag [#allocation3], 1
    %1262 = vsyncpa %s1261, 1

</llo_original>
